<compile_context>
chip_gen: v6e
topology: v6e:2x2x1
jax: 0.10.0
libtpu: 0.0.40
codegen_flags: <defaults>
</compile_context>

<pallas_src>
import jax
import jax.numpy as jnp
import numpy as np
from jax.experimental import pallas as pl
from jax.experimental.pallas import tpu as pltpu


def _round_up(x, m):
    return ((x + m - 1) // m) * m


def _auc_rank_kernel(predT_ref, pred_ref, targetT_ref, out_ref, rowsum_ref):
    """One (i-tile, j-tile) step of the pairwise rank computation.

    predT_ref   : (C, TI)  logits for the i-tile, classes on sublanes (resident over j)
    pred_ref    : (TJ, C)  logits for the j-tile (row-major layout)
    targetT_ref : (C, TI)  {0,1} labels for the i-tile                (resident over j)
    out_ref     : (C, TI)  t_i * rowsum_i, written on the last j step (lane-dense)
    rowsum_ref  : (C, TI)  f32 scratch accumulating sum_j comp_ij across j tiles
    """
    j = pl.program_id(1)
    nj = pl.num_programs(1)

    @pl.when(j == 0)
    def _init():
        rowsum_ref[...] = jnp.zeros_like(rowsum_ref)

    s_i = predT_ref[...].astype(jnp.float32)   # (C, TI)  -- i on lanes
    s_j = pred_ref[...].astype(jnp.float32)    # (TJ, C)  -- j on sublanes

    n_cls = s_i.shape[0]
    # C is small & static -> unrolled Python loop; each iteration is (TJ, TI) VPU work
    # (full (8,128) vregs) followed by a sublane reduce whose (1, TI) result is stored
    # lane-dense into the scratch row for that class.
    for c in range(n_cls):
        row_i = s_i[c:c + 1, :]                # (1, TI)  -- static sublane slice
        col_j = s_j[:, c:c + 1]                # (TJ, 1)  -- static lane slice
        # comp_ij = 1 if s_i > s_j, 0 if s_i < s_j, 0.5 on ties: 2 compares + 2 selects.
        comp = jnp.where(row_i > col_j, jnp.float32(1.0),
                         jnp.where(row_i < col_j, jnp.float32(0.0), jnp.float32(0.5)))
        rowsum_ref[c:c + 1, :] += jnp.sum(comp, axis=0, keepdims=True)

    @pl.when(j == nj - 1)
    def _finalize():
        t = targetT_ref[...].astype(jnp.float32)
        out_ref[...] = t * rowsum_ref[...]     # pad columns have t == 0


def auc_multi_cls_pallas(pred, target):
    """pred: (N, C) logits, target: (N, C) binary labels. Returns scalar f32 mean AUC."""
    n, c = pred.shape

    # Tile selection: i (accumulator axis) lives on lanes -> multiple of 128;
    # j (comparison axis) lives on sublanes -> multiple of 8.
    if n <= 128:
        tile_i = tile_j = 128
    elif n <= 512:
        tile_i = tile_j = 256
    else:
        tile_i, tile_j = 512, 256
    n_pad = _round_up(n, max(tile_i, tile_j))
    grid = (n_pad // tile_i, n_pad // tile_j)

    # Pad with fake samples: score +inf, label 0.
    #   comp(real_i, pad_j) == 0  -> real row-sums unaffected
    #   t_pad == 0                -> pad rows contribute nothing to rank sums / n_pos
    pad = n_pad - n
    pred_pad = jnp.pad(pred.astype(jnp.float32), ((0, pad), (0, 0)),
                       constant_values=jnp.inf)
    target_pad = jnp.pad(target.astype(jnp.float32), ((0, pad), (0, 0)),
                         constant_values=0.0)
    predT_pad = pred_pad.T                     # (C, n_pad) -- transpose hoisted, done once
    targetT_pad = target_pad.T                 # (C, n_pad)

    grid_spec = pltpu.PrefetchScalarGridSpec(
        num_scalar_prefetch=0,
        grid=grid,
        in_specs=[
            pl.BlockSpec((c, tile_i), lambda i, j: (0, i)),   # i-tile logits (C, TI)
            pl.BlockSpec((tile_j, c), lambda i, j: (j, 0)),   # j-tile logits (TJ, C)
            pl.BlockSpec((c, tile_i), lambda i, j: (0, i)),   # i-tile labels (C, TI)
        ],
        out_specs=pl.BlockSpec((c, tile_i), lambda i, j: (0, i)),
        scratch_shapes=[pltpu.VMEM((c, tile_i), jnp.float32)],
    )

    pos_rank = pl.pallas_call(
        _auc_rank_kernel,
        out_shape=jax.ShapeDtypeStruct((c, n_pad), jnp.float32),
        grid_spec=grid_spec,
        compiler_params=pltpu.CompilerParams(
            dimension_semantics=("parallel", "arbitrary")),
    )(predT_pad, pred_pad, targetT_pad)

    # Tiny O(N*C) epilogue: Mann-Whitney identity per class, then mean over classes.
    rank_sum = jnp.sum(pos_rank, axis=1)                       # (C,) = sum_i t_i*rowsum_i
    t32 = target.astype(jnp.float32)
    n_pos = jnp.sum(t32, axis=0)                               # (C,)
    n_neg = jnp.float32(n) - n_pos
    num = rank_sum - 0.5 * n_pos * n_pos                       # = #(pos>neg) + 0.5*#ties
    denom = n_pos * n_neg
    safe_denom = jnp.where(denom > 0.0, denom, 1.0)
    auc_c = jnp.where(denom > 0.0, num / safe_denom, jnp.float32(0.5))
    return jnp.mean(auc_c)


def _reference_auc(pred_np, target_np):
    """Pure-numpy reference replicating roc_auc_score via pair counting (f64 sigmoid)."""
    s = 1.0 / (1.0 + np.exp(-pred_np.astype(np.float64)))
    t = target_np.astype(np.float64)
    n, c = s.shape
    total = 0.0
    for cls in range(c):
        sc, tc = s[:, cls], t[:, cls]
        n_pos, n_neg = tc.sum(), (1.0 - tc).sum()
        if n_pos == 0 or n_neg == 0:
            total += 0.5
            continue
        gt = (sc[:, None] > sc[None, :]).astype(np.float64)
        eq = (sc[:, None] == sc[None, :]).astype(np.float64)
        w = tc[:, None] * (1.0 - tc[None, :])
        total += ((gt + 0.5 * eq) * w).sum() / (n_pos * n_neg)
    return total / c


if __name__ == "__main__":
    key = jax.random.PRNGKey(0)
    k1, k2, k3, k4 = jax.random.split(key, 4)

    # Case 1: original small shape (8 samples, 4 classes).
    N, C = 8, 4
    pred = jax.random.normal(k1, (N, C), dtype=jnp.float32)
    target = (jax.random.uniform(k2, (N, C)) > 0.5).astype(jnp.float32)
    auc = auc_multi_cls_pallas(pred, target)
    jax.block_until_ready(auc)
    ref = _reference_auc(np.asarray(pred), np.asarray(target))
    assert abs(float(auc) - ref) < 1e-5, (float(auc), ref)

    # Case 2: non-tile-aligned shape to exercise padding (50 samples, 6 classes).
    N2, C2 = 50, 6
    pred2 = jax.random.normal(k3, (N2, C2), dtype=jnp.float32)
    target2 = (jax.random.uniform(k4, (N2, C2)) > 0.5).astype(jnp.float32)
    auc2 = auc_multi_cls_pallas(pred2, target2)
    jax.block_until_ready(auc2)
    ref2 = _reference_auc(np.asarray(pred2), np.asarray(target2))
    assert abs(float(auc2) - ref2) < 1e-5, (float(auc2), ref2)

    print("KERNEL_OK")
</pallas_src>

<mosaic_0001>
module attributes {stable_mosaic.version = 11 : i64} {
  func.func @_auc_rank_kernel(%arg0: i32, %arg1: i32, %arg2: memref<4x128xf32, #tpu.memory_space<vmem>>, %arg3: memref<128x4xf32, #tpu.memory_space<vmem>>, %arg4: memref<4x128xf32, #tpu.memory_space<vmem>>, %arg5: memref<4x128xf32, #tpu.memory_space<vmem>>, %arg6: memref<4x128xf32, #tpu.memory_space<vmem>>) attributes {dimension_semantics = [#tpu.dimension_semantics<parallel>, #tpu.dimension_semantics<arbitrary>], iteration_bounds = array<i64: 1, 1>, scalar_prefetch = 0 : i64, scratch_operands = 1 : i64, tpu.core_type = #tpu.core_type<tc>, window_params = [{transform_indices = @transform_0, window_bounds = array<i64: 4, 128>}, {transform_indices = @transform_1, window_bounds = array<i64: 128, 4>}, {transform_indices = @transform_2, window_bounds = array<i64: 4, 128>}, {transform_indices = @transform_3, window_bounds = array<i64: 4, 128>}]} {
    %c0_i32 = arith.constant 0 : i32
    %0 = arith.cmpi eq, %arg1, %c0_i32 : i32
    %1 = arith.extui %0 : i1 to i32
    %c0_i32_0 = arith.constant 0 : i32
    %2 = arith.cmpi ne, %1, %c0_i32_0 : i32
    scf.if %2 {
      %cst_34 = arith.constant 0.000000e+00 : f32
      %80 = vector.broadcast %cst_34 : f32 to vector<4x128xf32>
      %c0_35 = arith.constant 0 : index
      %c0_36 = arith.constant 0 : index
      %81 = vector.load %arg6[%c0_35, %c0_36] : memref<4x128xf32, #tpu.memory_space<vmem>>, vector<4x128xf32>
      tpu.vector_store %arg6[%c0_35, %c0_36], %80 {strides = array<i32>} : memref<4x128xf32, #tpu.memory_space<vmem>>, vector<4x128xf32>,
    } else {
    }
    %c0 = arith.constant 0 : index
    %c0_1 = arith.constant 0 : index
    %3 = vector.load %arg2[%c0, %c0_1] : memref<4x128xf32, #tpu.memory_space<vmem>>, vector<4x128xf32>
    %c0_2 = arith.constant 0 : index
    %c0_3 = arith.constant 0 : index
    %4 = vector.load %arg3[%c0_2, %c0_3] : memref<128x4xf32, #tpu.memory_space<vmem>>, vector<128x4xf32>
    %5 = vector.extract_strided_slice %3 {offsets = [0, 0], sizes = [1, 128], strides = [1, 1]} : vector<4x128xf32> to vector<1x128xf32>
    %6 = vector.extract_strided_slice %4 {offsets = [0, 0], sizes = [128, 1], strides = [1, 1]} : vector<128x4xf32> to vector<128x1xf32>
    %7 = vector.broadcast %5 : vector<1x128xf32> to vector<128x128xf32>
    %8 = vector.broadcast %6 : vector<128x1xf32> to vector<128x128xf32>
    %9 = arith.cmpf ogt, %7, %8 : vector<128x128xf32>
    %10 = vector.broadcast %5 : vector<1x128xf32> to vector<128x128xf32>
    %11 = vector.broadcast %6 : vector<128x1xf32> to vector<128x128xf32>
    %12 = arith.cmpf olt, %10, %11 : vector<128x128xf32>
    %cst = arith.constant 0.000000e+00 : f32
    %cst_4 = arith.constant 5.000000e-01 : f32
    %13 = vector.broadcast %cst : f32 to vector<128x128xf32>
    %14 = vector.broadcast %cst_4 : f32 to vector<128x128xf32>
    %15 = arith.select %12, %13, %14 : vector<128x128xi1>, vector<128x128xf32>
    %cst_5 = arith.constant 1.000000e+00 : f32
    %16 = vector.broadcast %cst_5 : f32 to vector<128x128xf32>
    %17 = arith.select %9, %16, %15 : vector<128x128xi1>, vector<128x128xf32>
    %c0_6 = arith.constant 0 : index
    %c0_7 = arith.constant 0 : index
    %18 = vector.load %arg6[%c0_6, %c0_7] : memref<4x128xf32, #tpu.memory_space<vmem>>, vector<1x128xf32>
    %cst_8 = arith.constant dense<0.000000e+00> : vector<128xf32>
    %19 = vector.multi_reduction <add>, %17, %cst_8 [0] : vector<128x128xf32> to vector<128xf32>
    %20 = vector.shape_cast %19 : vector<128xf32> to vector<1x128xf32>
    %21 = arith.addf %18, %20 : vector<1x128xf32>
    %c0_9 = arith.constant 0 : index
    %c0_10 = arith.constant 0 : index
    %22 = vector.load %arg6[%c0_9, %c0_10] : memref<4x128xf32, #tpu.memory_space<vmem>>, vector<1x128xf32>
    tpu.vector_store %arg6[%c0_9, %c0_10], %21 {strides = array<i32>} : memref<4x128xf32, #tpu.memory_space<vmem>>, vector<1x128xf32>,
    %23 = vector.extract_strided_slice %3 {offsets = [1, 0], sizes = [1, 128], strides = [1, 1]} : vector<4x128xf32> to vector<1x128xf32>
    %24 = vector.extract_strided_slice %4 {offsets = [0, 1], sizes = [128, 1], strides = [1, 1]} : vector<128x4xf32> to vector<128x1xf32>
    %25 = vector.broadcast %23 : vector<1x128xf32> to vector<128x128xf32>
    %26 = vector.broadcast %24 : vector<128x1xf32> to vector<128x128xf32>
    %27 = arith.cmpf ogt, %25, %26 : vector<128x128xf32>
    %28 = vector.broadcast %23 : vector<1x128xf32> to vector<128x128xf32>
    %29 = vector.broadcast %24 : vector<128x1xf32> to vector<128x128xf32>
    %30 = arith.cmpf olt, %28, %29 : vector<128x128xf32>
    %cst_11 = arith.constant 0.000000e+00 : f32
    %cst_12 = arith.constant 5.000000e-01 : f32
    %31 = vector.broadcast %cst_11 : f32 to vector<128x128xf32>
    %32 = vector.broadcast %cst_12 : f32 to vector<128x128xf32>
    %33 = arith.select %30, %31, %32 : vector<128x128xi1>, vector<128x128xf32>
    %cst_13 = arith.constant 1.000000e+00 : f32
    %34 = vector.broadcast %cst_13 : f32 to vector<128x128xf32>
    %35 = arith.select %27, %34, %33 : vector<128x128xi1>, vector<128x128xf32>
    %c1 = arith.constant 1 : index
    %c0_14 = arith.constant 0 : index
    %36 = vector.load %arg6[%c1, %c0_14] : memref<4x128xf32, #tpu.memory_space<vmem>>, vector<1x128xf32>
    %cst_15 = arith.constant dense<0.000000e+00> : vector<128xf32>
    %37 = vector.multi_reduction <add>, %35, %cst_15 [0] : vector<128x128xf32> to vector<128xf32>
    %38 = vector.shape_cast %37 : vector<128xf32> to vector<1x128xf32>
    %39 = arith.addf %36, %38 : vector<1x128xf32>
    %c1_16 = arith.constant 1 : index
    %c0_17 = arith.constant 0 : index
    %40 = vector.load %arg6[%c1_16, %c0_17] : memref<4x128xf32, #tpu.memory_space<vmem>>, vector<1x128xf32>
    tpu.vector_store %arg6[%c1_16, %c0_17], %39 {strides = array<i32>} : memref<4x128xf32, #tpu.memory_space<vmem>>, vector<1x128xf32>,
    %41 = vector.extract_strided_slice %3 {offsets = [2, 0], sizes = [1, 128], strides = [1, 1]} : vector<4x128xf32> to vector<1x128xf32>
    %42 = vector.extract_strided_slice %4 {offsets = [0, 2], sizes = [128, 1], strides = [1, 1]} : vector<128x4xf32> to vector<128x1xf32>
    %43 = vector.broadcast %41 : vector<1x128xf32> to vector<128x128xf32>
    %44 = vector.broadcast %42 : vector<128x1xf32> to vector<128x128xf32>
    %45 = arith.cmpf ogt, %43, %44 : vector<128x128xf32>
    %46 = vector.broadcast %41 : vector<1x128xf32> to vector<128x128xf32>
    %47 = vector.broadcast %42 : vector<128x1xf32> to vector<128x128xf32>
    %48 = arith.cmpf olt, %46, %47 : vector<128x128xf32>
    %cst_18 = arith.constant 0.000000e+00 : f32
    %cst_19 = arith.constant 5.000000e-01 : f32
    %49 = vector.broadcast %cst_18 : f32 to vector<128x128xf32>
    %50 = vector.broadcast %cst_19 : f32 to vector<128x128xf32>
    %51 = arith.select %48, %49, %50 : vector<128x128xi1>, vector<128x128xf32>
    %cst_20 = arith.constant 1.000000e+00 : f32
    %52 = vector.broadcast %cst_20 : f32 to vector<128x128xf32>
    %53 = arith.select %45, %52, %51 : vector<128x128xi1>, vector<128x128xf32>
    %c2 = arith.constant 2 : index
    %c0_21 = arith.constant 0 : index
    %54 = vector.load %arg6[%c2, %c0_21] : memref<4x128xf32, #tpu.memory_space<vmem>>, vector<1x128xf32>
    %cst_22 = arith.constant dense<0.000000e+00> : vector<128xf32>
    %55 = vector.multi_reduction <add>, %53, %cst_22 [0] : vector<128x128xf32> to vector<128xf32>
    %56 = vector.shape_cast %55 : vector<128xf32> to vector<1x128xf32>
    %57 = arith.addf %54, %56 : vector<1x128xf32>
    %c2_23 = arith.constant 2 : index
    %c0_24 = arith.constant 0 : index
    %58 = vector.load %arg6[%c2_23, %c0_24] : memref<4x128xf32, #tpu.memory_space<vmem>>, vector<1x128xf32>
    tpu.vector_store %arg6[%c2_23, %c0_24], %57 {strides = array<i32>} : memref<4x128xf32, #tpu.memory_space<vmem>>, vector<1x128xf32>,
    %59 = vector.extract_strided_slice %3 {offsets = [3, 0], sizes = [1, 128], strides = [1, 1]} : vector<4x128xf32> to vector<1x128xf32>
    %60 = vector.extract_strided_slice %4 {offsets = [0, 3], sizes = [128, 1], strides = [1, 1]} : vector<128x4xf32> to vector<128x1xf32>
    %61 = vector.broadcast %59 : vector<1x128xf32> to vector<128x128xf32>
    %62 = vector.broadcast %60 : vector<128x1xf32> to vector<128x128xf32>
    %63 = arith.cmpf ogt, %61, %62 : vector<128x128xf32>
    %64 = vector.broadcast %59 : vector<1x128xf32> to vector<128x128xf32>
    %65 = vector.broadcast %60 : vector<128x1xf32> to vector<128x128xf32>
    %66 = arith.cmpf olt, %64, %65 : vector<128x128xf32>
    %cst_25 = arith.constant 0.000000e+00 : f32
    %cst_26 = arith.constant 5.000000e-01 : f32
    %67 = vector.broadcast %cst_25 : f32 to vector<128x128xf32>
    %68 = vector.broadcast %cst_26 : f32 to vector<128x128xf32>
    %69 = arith.select %66, %67, %68 : vector<128x128xi1>, vector<128x128xf32>
    %cst_27 = arith.constant 1.000000e+00 : f32
    %70 = vector.broadcast %cst_27 : f32 to vector<128x128xf32>
    %71 = arith.select %63, %70, %69 : vector<128x128xi1>, vector<128x128xf32>
    %c3 = arith.constant 3 : index
    %c0_28 = arith.constant 0 : index
    %72 = vector.load %arg6[%c3, %c0_28] : memref<4x128xf32, #tpu.memory_space<vmem>>, vector<1x128xf32>
    %cst_29 = arith.constant dense<0.000000e+00> : vector<128xf32>
    %73 = vector.multi_reduction <add>, %71, %cst_29 [0] : vector<128x128xf32> to vector<128xf32>
    %74 = vector.shape_cast %73 : vector<128xf32> to vector<1x128xf32>
    %75 = arith.addf %72, %74 : vector<1x128xf32>
    %c3_30 = arith.constant 3 : index
    %c0_31 = arith.constant 0 : index
    %76 = vector.load %arg6[%c3_30, %c0_31] : memref<4x128xf32, #tpu.memory_space<vmem>>, vector<1x128xf32>
    tpu.vector_store %arg6[%c3_30, %c0_31], %75 {strides = array<i32>} : memref<4x128xf32, #tpu.memory_space<vmem>>, vector<1x128xf32>,
    %c0_i32_32 = arith.constant 0 : i32
    %77 = arith.cmpi eq, %arg1, %c0_i32_32 : i32
    %78 = arith.extui %77 : i1 to i32
    %c0_i32_33 = arith.constant 0 : i32
    %79 = arith.cmpi ne, %78, %c0_i32_33 : i32
    scf.if %79 {
      %c0_34 = arith.constant 0 : index
      %c0_35 = arith.constant 0 : index
      %80 = vector.load %arg4[%c0_34, %c0_35] : memref<4x128xf32, #tpu.memory_space<vmem>>, vector<4x128xf32>
      %c0_36 = arith.constant 0 : index
      %c0_37 = arith.constant 0 : index
      %81 = vector.load %arg6[%c0_36, %c0_37] : memref<4x128xf32, #tpu.memory_space<vmem>>, vector<4x128xf32>
      %82 = arith.mulf %80, %81 : vector<4x128xf32>
      %c0_38 = arith.constant 0 : index
      %c0_39 = arith.constant 0 : index
      %83 = vector.load %arg5[%c0_38, %c0_39] : memref<4x128xf32, #tpu.memory_space<vmem>>, vector<4x128xf32>
      tpu.vector_store %arg5[%c0_38, %c0_39], %82 {strides = array<i32>} : memref<4x128xf32, #tpu.memory_space<vmem>>, vector<4x128xf32>,
    } else {
    }
    return
  }
  func.func @transform_0(%arg0: i32, %arg1: i32) -> (i32, i32) {
    %c0_i32 = arith.constant 0 : i32
    %c0_i32_0 = arith.constant 0 : i32
    return %c0_i32, %arg0 : i32, i32
  }
  func.func @transform_1(%arg0: i32, %arg1: i32) -> (i32, i32) {
    %c0_i32 = arith.constant 0 : i32
    %c0_i32_0 = arith.constant 0 : i32
    return %arg1, %c0_i32 : i32, i32
  }
  func.func @transform_2(%arg0: i32, %arg1: i32) -> (i32, i32) {
    %c0_i32 = arith.constant 0 : i32
    %c0_i32_0 = arith.constant 0 : i32
    return %c0_i32, %arg0 : i32, i32
  }
  func.func @transform_3(%arg0: i32, %arg1: i32) -> (i32, i32) {
    %c0_i32 = arith.constant 0 : i32
    %c0_i32_0 = arith.constant 0 : i32
    return %c0_i32, %arg0 : i32, i32
  }
}

</mosaic_0001>

<llo_original>
// kernel: tpu_custom_call.1
$region0: #{tpu_custom_call.1}
  #allocation0 [shape = 'u32[]', space=smem, size = 0x4, offset = 0x4, fixed_abs, tag = 'smem constant byte address 0x4 - core index']
  #allocation1 [shape = 'u32[144,128]{1,0:T(1,128)}', space=vmem, size = 0x12000, scoped, tag = 'internal scratch']
  #allocation2 [shape = 'f32[4,128]{1,0:T(4,128)}', space=vmem, size = 0x800, scoped, tag = 'scratch operand']
  %s0 = inlined_call_operand.vmem [shape: f32[4,128], index: 0, kind: input, shape index: {}]
  %s1 = inlined_call_operand.vmem [shape: f32[128,4], index: 1, kind: input, shape index: {}]
  %s2 = inlined_call_operand.vmem [shape: f32[4,128], index: 2, kind: input, shape index: {}]
  %s3 = inlined_call_operand.hbm [shape: f32[4,128], index: 3, kind: output, shape index: {}]
  %s4 = sld [smem:[#allocation0]]
  $region30: #{tpu_custom_call.1} parent=0
    _
  %s6 = ssub.s32 1, %s4
  %s7 = scalar_select 0, %s6, %s4
  $region1: #{tpu_custom_call.1} parent=0
    #allocation3 [shape = 'u8[2048]{0}', space=vmem, size = 0x800, scoped, tag = 'output window, operand 0, single buffered']
    #allocation4 [shape = 's32[1]{0}', space=sflag, size = 0x4, scoped, tag = 'scoped memory for tpu_custom_call.1']
    %8 = vsyncpa [#allocation4], 0
    // Predicated region
    $region2: #{tpu_custom_call.1} parent=1 // pred_check
      _
    $region3: #{tpu_custom_call.1} parent=1 // pred_check_branch
      %10 = sbr.rel (0) target = $region5
    $region4: #{tpu_custom_call.1} parent=1 // pred_region
      _
    $region5: #{tpu_custom_call.1} parent=1 // pred_fallthru
      _
    // Predicated region
    $region6: #{tpu_custom_call.1} parent=1 // pred_check
      _
    $region7: #{tpu_custom_call.1} parent=1 // pred_check_branch
      %12 = sbr.rel (0) target = $region9
    $region8: #{tpu_custom_call.1} parent=1 // pred_region
      _
    $region9: #{tpu_custom_call.1} parent=1 // pred_fallthru
      _
    // Predicated region
    $region10: #{tpu_custom_call.1} parent=1 // pred_check
      _
    $region11: #{tpu_custom_call.1} parent=1 // pred_check_branch
      %14 = sbr.rel (0) target = $region13
    $region12: #{tpu_custom_call.1} parent=1 // pred_region
      _
    $region13: #{tpu_custom_call.1} parent=1 // pred_fallthru
      _
    %p15 = scmp.eq.s32.totalorder 0, 0
    // Predicated region
    $region14: #{tpu_custom_call.1} parent=1 // pred_check
      %p16 = pneg %p15
    $region15: #{tpu_custom_call.1} parent=1 // pred_check_branch
      %18 = sbr.rel (%p16) target = $region17
    $region16: #{tpu_custom_call.1} parent=1 // pred_region
      %19 = vst [vmem:[#allocation2] sm:$0xf] 0.0
    $region17: #{tpu_custom_call.1} parent=1 // pred_fallthru
      _
    %v20 = vld [vmem:[%s0] sm:$0xf]
    %v21 = vld [vmem:[%s1] sm:$0xff]
    %v22 = vld [vmem:[%s1 + $0x8] sm:$0xff]
    %v23 = vld [vmem:[%s1 + $0x10] sm:$0xff]
    %v24 = vld [vmem:[%s1 + $0x18] sm:$0xff]
    %v25 = vld [vmem:[%s1 + $0x20] sm:$0xff]
    %v26 = vld [vmem:[%s1 + $0x28] sm:$0xff]
    %v27 = vld [vmem:[%s1 + $0x30] sm:$0xff]
    %v28 = vld [vmem:[%s1 + $0x38] sm:$0xff]
    %v29 = vld [vmem:[%s1 + $0x40] sm:$0xff]
    %v30 = vld [vmem:[%s1 + $0x48] sm:$0xff]
    %v31 = vld [vmem:[%s1 + $0x50] sm:$0xff]
    %v32 = vld [vmem:[%s1 + $0x58] sm:$0xff]
    %v33 = vld [vmem:[%s1 + $0x60] sm:$0xff]
    %v34 = vld [vmem:[%s1 + $0x68] sm:$0xff]
    %v35 = vld [vmem:[%s1 + $0x70] sm:$0xff]
    %v36 = vld [vmem:[%s1 + $0x78] sm:$0xff]
    %v37 = vlaneseq
    %v38 = vshrl.u32 %v37, 7
    %v39 = vsub.s32 0, %v38
    %v40 = vrot.slane %v20, %v39
    %42 = vset.pattern.permute.xlu0 0
    %43 = vperm.xlu0 %42, %v21
    %v44 = vpop.permute.xlu0 %43
    %47 = vset.pattern.permute.xlu0 0
    %48 = vperm.xlu0 %47, %v22
    %v49 = vpop.permute.xlu0 %48
    %52 = vset.pattern.permute.xlu0 0
    %53 = vperm.xlu0 %52, %v23
    %v54 = vpop.permute.xlu0 %53
    %57 = vset.pattern.permute.xlu0 0
    %58 = vperm.xlu0 %57, %v24
    %v59 = vpop.permute.xlu0 %58
    %62 = vset.pattern.permute.xlu0 0
    %63 = vperm.xlu0 %62, %v25
    %v64 = vpop.permute.xlu0 %63
    %67 = vset.pattern.permute.xlu0 0
    %68 = vperm.xlu0 %67, %v26
    %v69 = vpop.permute.xlu0 %68
    %72 = vset.pattern.permute.xlu0 0
    %73 = vperm.xlu0 %72, %v27
    %v74 = vpop.permute.xlu0 %73
    %77 = vset.pattern.permute.xlu0 0
    %78 = vperm.xlu0 %77, %v28
    %v79 = vpop.permute.xlu0 %78
    %82 = vset.pattern.permute.xlu0 0
    %83 = vperm.xlu0 %82, %v29
    %v84 = vpop.permute.xlu0 %83
    %87 = vset.pattern.permute.xlu0 0
    %88 = vperm.xlu0 %87, %v30
    %v89 = vpop.permute.xlu0 %88
    %92 = vset.pattern.permute.xlu0 0
    %93 = vperm.xlu0 %92, %v31
    %v94 = vpop.permute.xlu0 %93
    %97 = vset.pattern.permute.xlu0 0
    %98 = vperm.xlu0 %97, %v32
    %v99 = vpop.permute.xlu0 %98
    %102 = vset.pattern.permute.xlu0 0
    %103 = vperm.xlu0 %102, %v33
    %v104 = vpop.permute.xlu0 %103
    %107 = vset.pattern.permute.xlu0 0
    %108 = vperm.xlu0 %107, %v34
    %v109 = vpop.permute.xlu0 %108
    %112 = vset.pattern.permute.xlu0 0
    %113 = vperm.xlu0 %112, %v35
    %v114 = vpop.permute.xlu0 %113
    %117 = vset.pattern.permute.xlu0 0
    %118 = vperm.xlu0 %117, %v36
    %v119 = vpop.permute.xlu0 %118
    %vm121 = vcmp.gt.f32.partialorder %v40, %v44
    %vm122 = vcmp.gt.f32.partialorder %v40, %v49
    %vm123 = vcmp.gt.f32.partialorder %v40, %v54
    %vm124 = vcmp.gt.f32.partialorder %v40, %v59
    %vm125 = vcmp.gt.f32.partialorder %v40, %v64
    %vm126 = vcmp.gt.f32.partialorder %v40, %v69
    %vm127 = vcmp.gt.f32.partialorder %v40, %v74
    %vm128 = vcmp.gt.f32.partialorder %v40, %v79
    %vm129 = vcmp.gt.f32.partialorder %v40, %v84
    %vm130 = vcmp.gt.f32.partialorder %v40, %v89
    %vm131 = vcmp.gt.f32.partialorder %v40, %v94
    %vm132 = vcmp.gt.f32.partialorder %v40, %v99
    %vm133 = vcmp.gt.f32.partialorder %v40, %v104
    %vm134 = vcmp.gt.f32.partialorder %v40, %v109
    %vm135 = vcmp.gt.f32.partialorder %v40, %v114
    %vm136 = vcmp.gt.f32.partialorder %v40, %v119
    %vm137 = vcmp.lt.f32.partialorder %v40, %v44
    %vm138 = vcmp.lt.f32.partialorder %v40, %v49
    %vm139 = vcmp.lt.f32.partialorder %v40, %v54
    %vm140 = vcmp.lt.f32.partialorder %v40, %v59
    %vm141 = vcmp.lt.f32.partialorder %v40, %v64
    %vm142 = vcmp.lt.f32.partialorder %v40, %v69
    %vm143 = vcmp.lt.f32.partialorder %v40, %v74
    %vm144 = vcmp.lt.f32.partialorder %v40, %v79
    %vm145 = vcmp.lt.f32.partialorder %v40, %v84
    %vm146 = vcmp.lt.f32.partialorder %v40, %v89
    %vm147 = vcmp.lt.f32.partialorder %v40, %v94
    %vm148 = vcmp.lt.f32.partialorder %v40, %v99
    %vm149 = vcmp.lt.f32.partialorder %v40, %v104
    %vm150 = vcmp.lt.f32.partialorder %v40, %v109
    %vm151 = vcmp.lt.f32.partialorder %v40, %v114
    %vm152 = vcmp.lt.f32.partialorder %v40, %v119
    %v153 = vsel %vm137, 0.0, 0.5
    %v154 = vsel %vm138, 0.0, 0.5
    %v155 = vsel %vm139, 0.0, 0.5
    %v156 = vsel %vm140, 0.0, 0.5
    %v157 = vsel %vm141, 0.0, 0.5
    %v158 = vsel %vm142, 0.0, 0.5
    %v159 = vsel %vm143, 0.0, 0.5
    %v160 = vsel %vm144, 0.0, 0.5
    %v161 = vsel %vm145, 0.0, 0.5
    %v162 = vsel %vm146, 0.0, 0.5
    %v163 = vsel %vm147, 0.0, 0.5
    %v164 = vsel %vm148, 0.0, 0.5
    %v165 = vsel %vm149, 0.0, 0.5
    %v166 = vsel %vm150, 0.0, 0.5
    %v167 = vsel %vm151, 0.0, 0.5
    %v168 = vsel %vm152, 0.0, 0.5
    %v169 = vsel %vm121, 1.0, %v153
    %v170 = vsel %vm122, 1.0, %v154
    %v171 = vsel %vm123, 1.0, %v155
    %v172 = vsel %vm124, 1.0, %v156
    %v173 = vsel %vm125, 1.0, %v157
    %v174 = vsel %vm126, 1.0, %v158
    %v175 = vsel %vm127, 1.0, %v159
    %v176 = vsel %vm128, 1.0, %v160
    %v177 = vsel %vm129, 1.0, %v161
    %v178 = vsel %vm130, 1.0, %v162
    %v179 = vsel %vm131, 1.0, %v163
    %v180 = vsel %vm132, 1.0, %v164
    %v181 = vsel %vm133, 1.0, %v165
    %v182 = vsel %vm134, 1.0, %v166
    %v183 = vsel %vm135, 1.0, %v167
    %v184 = vsel %vm136, 1.0, %v168
    %v185 = vld [vmem:[#allocation2] sm:$0x1]
    %v186 = vadd.f32 %v169, %v170
    %v187 = vadd.f32 %v186, %v171
    %v188 = vadd.f32 %v187, %v172
    %v189 = vadd.f32 %v188, %v173
    %v190 = vadd.f32 %v189, %v174
    %v191 = vadd.f32 %v190, %v175
    %v192 = vadd.f32 %v191, %v176
    %v193 = vadd.f32 %v192, %v177
    %v194 = vadd.f32 %v193, %v178
    %v195 = vadd.f32 %v194, %v179
    %v196 = vadd.f32 %v195, %v180
    %v197 = vadd.f32 %v196, %v181
    %v198 = vadd.f32 %v197, %v182
    %v199 = vadd.f32 %v198, %v183
    %v200 = vadd.f32 %v199, %v184
    %v201 = vrot.slane %v200, 4
    %v202 = vadd.f32 %v200, %v201
    %v203 = vrot.slane %v202, 2
    %v204 = vadd.f32 %v202, %v203
    %v205 = vrot.slane %v204, 1
    %v206 = vadd.f32 %v204, %v205
    %v207 = vadd.f32 %v185, %v206
    %208 = vst [vmem:[#allocation2] sm:$0x1] %v207
    %v209 = vlaneseq
    %v210 = vshrl.u32 %v209, 7
    %v211 = vsub.s32 1, %v210
    %v212 = vrot.slane %v20, %v211
    %213 = vset.pattern.permute.xlu0 1
    %214 = vperm.xlu0 %213, %v21
    %v215 = vpop.permute.xlu0 %214
    %217 = vset.pattern.permute.xlu0 1
    %218 = vperm.xlu0 %217, %v22
    %v219 = vpop.permute.xlu0 %218
    %221 = vset.pattern.permute.xlu0 1
    %222 = vperm.xlu0 %221, %v23
    %v223 = vpop.permute.xlu0 %222
    %225 = vset.pattern.permute.xlu0 1
    %226 = vperm.xlu0 %225, %v24
    %v227 = vpop.permute.xlu0 %226
    %229 = vset.pattern.permute.xlu0 1
    %230 = vperm.xlu0 %229, %v25
    %v231 = vpop.permute.xlu0 %230
    %233 = vset.pattern.permute.xlu0 1
    %234 = vperm.xlu0 %233, %v26
    %v235 = vpop.permute.xlu0 %234
    %237 = vset.pattern.permute.xlu0 1
    %238 = vperm.xlu0 %237, %v27
    %v239 = vpop.permute.xlu0 %238
    %241 = vset.pattern.permute.xlu0 1
    %242 = vperm.xlu0 %241, %v28
    %v243 = vpop.permute.xlu0 %242
    %245 = vset.pattern.permute.xlu0 1
    %246 = vperm.xlu0 %245, %v29
    %v247 = vpop.permute.xlu0 %246
    %249 = vset.pattern.permute.xlu0 1
    %250 = vperm.xlu0 %249, %v30
    %v251 = vpop.permute.xlu0 %250
    %253 = vset.pattern.permute.xlu0 1
    %254 = vperm.xlu0 %253, %v31
    %v255 = vpop.permute.xlu0 %254
    %257 = vset.pattern.permute.xlu0 1
    %258 = vperm.xlu0 %257, %v32
    %v259 = vpop.permute.xlu0 %258
    %261 = vset.pattern.permute.xlu0 1
    %262 = vperm.xlu0 %261, %v33
    %v263 = vpop.permute.xlu0 %262
    %265 = vset.pattern.permute.xlu0 1
    %266 = vperm.xlu0 %265, %v34
    %v267 = vpop.permute.xlu0 %266
    %269 = vset.pattern.permute.xlu0 1
    %270 = vperm.xlu0 %269, %v35
    %v271 = vpop.permute.xlu0 %270
    %273 = vset.pattern.permute.xlu0 1
    %274 = vperm.xlu0 %273, %v36
    %v275 = vpop.permute.xlu0 %274
    %vm277 = vcmp.gt.f32.partialorder %v212, %v215
    %vm278 = vcmp.gt.f32.partialorder %v212, %v219
    %vm279 = vcmp.gt.f32.partialorder %v212, %v223
    %vm280 = vcmp.gt.f32.partialorder %v212, %v227
    %vm281 = vcmp.gt.f32.partialorder %v212, %v231
    %vm282 = vcmp.gt.f32.partialorder %v212, %v235
    %vm283 = vcmp.gt.f32.partialorder %v212, %v239
    %vm284 = vcmp.gt.f32.partialorder %v212, %v243
    %vm285 = vcmp.gt.f32.partialorder %v212, %v247
    %vm286 = vcmp.gt.f32.partialorder %v212, %v251
    %vm287 = vcmp.gt.f32.partialorder %v212, %v255
    %vm288 = vcmp.gt.f32.partialorder %v212, %v259
    %vm289 = vcmp.gt.f32.partialorder %v212, %v263
    %vm290 = vcmp.gt.f32.partialorder %v212, %v267
    %vm291 = vcmp.gt.f32.partialorder %v212, %v271
    %vm292 = vcmp.gt.f32.partialorder %v212, %v275
    %vm293 = vcmp.lt.f32.partialorder %v212, %v215
    %vm294 = vcmp.lt.f32.partialorder %v212, %v219
    %vm295 = vcmp.lt.f32.partialorder %v212, %v223
    %vm296 = vcmp.lt.f32.partialorder %v212, %v227
    %vm297 = vcmp.lt.f32.partialorder %v212, %v231
    %vm298 = vcmp.lt.f32.partialorder %v212, %v235
    %vm299 = vcmp.lt.f32.partialorder %v212, %v239
    %vm300 = vcmp.lt.f32.partialorder %v212, %v243
    %vm301 = vcmp.lt.f32.partialorder %v212, %v247
    %vm302 = vcmp.lt.f32.partialorder %v212, %v251
    %vm303 = vcmp.lt.f32.partialorder %v212, %v255
    %vm304 = vcmp.lt.f32.partialorder %v212, %v259
    %vm305 = vcmp.lt.f32.partialorder %v212, %v263
    %vm306 = vcmp.lt.f32.partialorder %v212, %v267
    %vm307 = vcmp.lt.f32.partialorder %v212, %v271
    %vm308 = vcmp.lt.f32.partialorder %v212, %v275
    %v309 = vsel %vm293, 0.0, 0.5
    %v310 = vsel %vm294, 0.0, 0.5
    %v311 = vsel %vm295, 0.0, 0.5
    %v312 = vsel %vm296, 0.0, 0.5
    %v313 = vsel %vm297, 0.0, 0.5
    %v314 = vsel %vm298, 0.0, 0.5
    %v315 = vsel %vm299, 0.0, 0.5
    %v316 = vsel %vm300, 0.0, 0.5
    %v317 = vsel %vm301, 0.0, 0.5
    %v318 = vsel %vm302, 0.0, 0.5
    %v319 = vsel %vm303, 0.0, 0.5
    %v320 = vsel %vm304, 0.0, 0.5
    %v321 = vsel %vm305, 0.0, 0.5
    %v322 = vsel %vm306, 0.0, 0.5
    %v323 = vsel %vm307, 0.0, 0.5
    %v324 = vsel %vm308, 0.0, 0.5
    %v325 = vsel %vm277, 1.0, %v309
    %v326 = vsel %vm278, 1.0, %v310
    %v327 = vsel %vm279, 1.0, %v311
    %v328 = vsel %vm280, 1.0, %v312
    %v329 = vsel %vm281, 1.0, %v313
    %v330 = vsel %vm282, 1.0, %v314
    %v331 = vsel %vm283, 1.0, %v315
    %v332 = vsel %vm284, 1.0, %v316
    %v333 = vsel %vm285, 1.0, %v317
    %v334 = vsel %vm286, 1.0, %v318
    %v335 = vsel %vm287, 1.0, %v319
    %v336 = vsel %vm288, 1.0, %v320
    %v337 = vsel %vm289, 1.0, %v321
    %v338 = vsel %vm290, 1.0, %v322
    %v339 = vsel %vm291, 1.0, %v323
    %v340 = vsel %vm292, 1.0, %v324
    %v341 = vld [vmem:[#allocation2 + $0x1] sm:$0x1]
    %v342 = vadd.f32 %v325, %v326
    %v343 = vadd.f32 %v342, %v327
    %v344 = vadd.f32 %v343, %v328
    %v345 = vadd.f32 %v344, %v329
    %v346 = vadd.f32 %v345, %v330
    %v347 = vadd.f32 %v346, %v331
    %v348 = vadd.f32 %v347, %v332
    %v349 = vadd.f32 %v348, %v333
    %v350 = vadd.f32 %v349, %v334
    %v351 = vadd.f32 %v350, %v335
    %v352 = vadd.f32 %v351, %v336
    %v353 = vadd.f32 %v352, %v337
    %v354 = vadd.f32 %v353, %v338
    %v355 = vadd.f32 %v354, %v339
    %v356 = vadd.f32 %v355, %v340
    %v357 = vrot.slane %v356, 4
    %v358 = vadd.f32 %v356, %v357
    %v359 = vrot.slane %v358, 2
    %v360 = vadd.f32 %v358, %v359
    %v361 = vrot.slane %v360, 1
    %v362 = vadd.f32 %v360, %v361
    %v363 = vadd.f32 %v341, %v362
    %364 = vst [vmem:[#allocation2 + $0x1] sm:$0x1] %v363
    %v365 = vlaneseq
    %v366 = vshrl.u32 %v365, 7
    %v367 = vsub.s32 2, %v366
    %v368 = vrot.slane %v20, %v367
    %369 = vset.pattern.permute.xlu0 2
    %370 = vperm.xlu0 %369, %v21
    %v371 = vpop.permute.xlu0 %370
    %373 = vset.pattern.permute.xlu0 2
    %374 = vperm.xlu0 %373, %v22
    %v375 = vpop.permute.xlu0 %374
    %377 = vset.pattern.permute.xlu0 2
    %378 = vperm.xlu0 %377, %v23
    %v379 = vpop.permute.xlu0 %378
    %381 = vset.pattern.permute.xlu0 2
    %382 = vperm.xlu0 %381, %v24
    %v383 = vpop.permute.xlu0 %382
    %385 = vset.pattern.permute.xlu0 2
    %386 = vperm.xlu0 %385, %v25
    %v387 = vpop.permute.xlu0 %386
    %389 = vset.pattern.permute.xlu0 2
    %390 = vperm.xlu0 %389, %v26
    %v391 = vpop.permute.xlu0 %390
    %393 = vset.pattern.permute.xlu0 2
    %394 = vperm.xlu0 %393, %v27
    %v395 = vpop.permute.xlu0 %394
    %397 = vset.pattern.permute.xlu0 2
    %398 = vperm.xlu0 %397, %v28
    %v399 = vpop.permute.xlu0 %398
    %401 = vset.pattern.permute.xlu0 2
    %402 = vperm.xlu0 %401, %v29
    %v403 = vpop.permute.xlu0 %402
    %405 = vset.pattern.permute.xlu0 2
    %406 = vperm.xlu0 %405, %v30
    %v407 = vpop.permute.xlu0 %406
    %409 = vset.pattern.permute.xlu0 2
    %410 = vperm.xlu0 %409, %v31
    %v411 = vpop.permute.xlu0 %410
    %413 = vset.pattern.permute.xlu0 2
    %414 = vperm.xlu0 %413, %v32
    %v415 = vpop.permute.xlu0 %414
    %417 = vset.pattern.permute.xlu0 2
    %418 = vperm.xlu0 %417, %v33
    %v419 = vpop.permute.xlu0 %418
    %421 = vset.pattern.permute.xlu0 2
    %422 = vperm.xlu0 %421, %v34
    %v423 = vpop.permute.xlu0 %422
    %425 = vset.pattern.permute.xlu0 2
    %426 = vperm.xlu0 %425, %v35
    %v427 = vpop.permute.xlu0 %426
    %429 = vset.pattern.permute.xlu0 2
    %430 = vperm.xlu0 %429, %v36
    %v431 = vpop.permute.xlu0 %430
    %vm433 = vcmp.gt.f32.partialorder %v368, %v371
    %vm434 = vcmp.gt.f32.partialorder %v368, %v375
    %vm435 = vcmp.gt.f32.partialorder %v368, %v379
    %vm436 = vcmp.gt.f32.partialorder %v368, %v383
    %vm437 = vcmp.gt.f32.partialorder %v368, %v387
    %vm438 = vcmp.gt.f32.partialorder %v368, %v391
    %vm439 = vcmp.gt.f32.partialorder %v368, %v395
    %vm440 = vcmp.gt.f32.partialorder %v368, %v399
    %vm441 = vcmp.gt.f32.partialorder %v368, %v403
    %vm442 = vcmp.gt.f32.partialorder %v368, %v407
    %vm443 = vcmp.gt.f32.partialorder %v368, %v411
    %vm444 = vcmp.gt.f32.partialorder %v368, %v415
    %vm445 = vcmp.gt.f32.partialorder %v368, %v419
    %vm446 = vcmp.gt.f32.partialorder %v368, %v423
    %vm447 = vcmp.gt.f32.partialorder %v368, %v427
    %vm448 = vcmp.gt.f32.partialorder %v368, %v431
    %vm449 = vcmp.lt.f32.partialorder %v368, %v371
    %vm450 = vcmp.lt.f32.partialorder %v368, %v375
    %vm451 = vcmp.lt.f32.partialorder %v368, %v379
    %vm452 = vcmp.lt.f32.partialorder %v368, %v383
    %vm453 = vcmp.lt.f32.partialorder %v368, %v387
    %vm454 = vcmp.lt.f32.partialorder %v368, %v391
    %vm455 = vcmp.lt.f32.partialorder %v368, %v395
    %vm456 = vcmp.lt.f32.partialorder %v368, %v399
    %vm457 = vcmp.lt.f32.partialorder %v368, %v403
    %vm458 = vcmp.lt.f32.partialorder %v368, %v407
    %vm459 = vcmp.lt.f32.partialorder %v368, %v411
    %vm460 = vcmp.lt.f32.partialorder %v368, %v415
    %vm461 = vcmp.lt.f32.partialorder %v368, %v419
    %vm462 = vcmp.lt.f32.partialorder %v368, %v423
    %vm463 = vcmp.lt.f32.partialorder %v368, %v427
    %vm464 = vcmp.lt.f32.partialorder %v368, %v431
    %v465 = vsel %vm449, 0.0, 0.5
    %v466 = vsel %vm450, 0.0, 0.5
    %v467 = vsel %vm451, 0.0, 0.5
    %v468 = vsel %vm452, 0.0, 0.5
    %v469 = vsel %vm453, 0.0, 0.5
    %v470 = vsel %vm454, 0.0, 0.5
    %v471 = vsel %vm455, 0.0, 0.5
    %v472 = vsel %vm456, 0.0, 0.5
    %v473 = vsel %vm457, 0.0, 0.5
    %v474 = vsel %vm458, 0.0, 0.5
    %v475 = vsel %vm459, 0.0, 0.5
    %v476 = vsel %vm460, 0.0, 0.5
    %v477 = vsel %vm461, 0.0, 0.5
    %v478 = vsel %vm462, 0.0, 0.5
    %v479 = vsel %vm463, 0.0, 0.5
    %v480 = vsel %vm464, 0.0, 0.5
    %v481 = vsel %vm433, 1.0, %v465
    %v482 = vsel %vm434, 1.0, %v466
    %v483 = vsel %vm435, 1.0, %v467
    %v484 = vsel %vm436, 1.0, %v468
    %v485 = vsel %vm437, 1.0, %v469
    %v486 = vsel %vm438, 1.0, %v470
    %v487 = vsel %vm439, 1.0, %v471
    %v488 = vsel %vm440, 1.0, %v472
    %v489 = vsel %vm441, 1.0, %v473
    %v490 = vsel %vm442, 1.0, %v474
    %v491 = vsel %vm443, 1.0, %v475
    %v492 = vsel %vm444, 1.0, %v476
    %v493 = vsel %vm445, 1.0, %v477
    %v494 = vsel %vm446, 1.0, %v478
    %v495 = vsel %vm447, 1.0, %v479
    %v496 = vsel %vm448, 1.0, %v480
    %v497 = vld [vmem:[#allocation2 + $0x2] sm:$0x1]
    %v498 = vadd.f32 %v481, %v482
    %v499 = vadd.f32 %v498, %v483
    %v500 = vadd.f32 %v499, %v484
    %v501 = vadd.f32 %v500, %v485
    %v502 = vadd.f32 %v501, %v486
    %v503 = vadd.f32 %v502, %v487
    %v504 = vadd.f32 %v503, %v488
    %v505 = vadd.f32 %v504, %v489
    %v506 = vadd.f32 %v505, %v490
    %v507 = vadd.f32 %v506, %v491
    %v508 = vadd.f32 %v507, %v492
    %v509 = vadd.f32 %v508, %v493
    %v510 = vadd.f32 %v509, %v494
    %v511 = vadd.f32 %v510, %v495
    %v512 = vadd.f32 %v511, %v496
    %v513 = vrot.slane %v512, 4
    %v514 = vadd.f32 %v512, %v513
    %v515 = vrot.slane %v514, 2
    %v516 = vadd.f32 %v514, %v515
    %v517 = vrot.slane %v516, 1
    %v518 = vadd.f32 %v516, %v517
    %v519 = vadd.f32 %v497, %v518
    %520 = vst [vmem:[#allocation2 + $0x2] sm:$0x1] %v519
    %v521 = vlaneseq
    %v522 = vshrl.u32 %v521, 7
    %v523 = vsub.s32 3, %v522
    %v524 = vrot.slane %v20, %v523
    %525 = vset.pattern.permute.xlu0 3
    %526 = vperm.xlu0 %525, %v21
    %v527 = vpop.permute.xlu0 %526
    %529 = vset.pattern.permute.xlu0 3
    %530 = vperm.xlu0 %529, %v22
    %v531 = vpop.permute.xlu0 %530
    %533 = vset.pattern.permute.xlu0 3
    %534 = vperm.xlu0 %533, %v23
    %v535 = vpop.permute.xlu0 %534
    %537 = vset.pattern.permute.xlu0 3
    %538 = vperm.xlu0 %537, %v24
    %v539 = vpop.permute.xlu0 %538
    %541 = vset.pattern.permute.xlu0 3
    %542 = vperm.xlu0 %541, %v25
    %v543 = vpop.permute.xlu0 %542
    %545 = vset.pattern.permute.xlu0 3
    %546 = vperm.xlu0 %545, %v26
    %v547 = vpop.permute.xlu0 %546
    %549 = vset.pattern.permute.xlu0 3
    %550 = vperm.xlu0 %549, %v27
    %v551 = vpop.permute.xlu0 %550
    %553 = vset.pattern.permute.xlu0 3
    %554 = vperm.xlu0 %553, %v28
    %v555 = vpop.permute.xlu0 %554
    %557 = vset.pattern.permute.xlu0 3
    %558 = vperm.xlu0 %557, %v29
    %v559 = vpop.permute.xlu0 %558
    %561 = vset.pattern.permute.xlu0 3
    %562 = vperm.xlu0 %561, %v30
    %v563 = vpop.permute.xlu0 %562
    %565 = vset.pattern.permute.xlu0 3
    %566 = vperm.xlu0 %565, %v31
    %v567 = vpop.permute.xlu0 %566
    %569 = vset.pattern.permute.xlu0 3
    %570 = vperm.xlu0 %569, %v32
    %v571 = vpop.permute.xlu0 %570
    %573 = vset.pattern.permute.xlu0 3
    %574 = vperm.xlu0 %573, %v33
    %v575 = vpop.permute.xlu0 %574
    %577 = vset.pattern.permute.xlu0 3
    %578 = vperm.xlu0 %577, %v34
    %v579 = vpop.permute.xlu0 %578
    %581 = vset.pattern.permute.xlu0 3
    %582 = vperm.xlu0 %581, %v35
    %v583 = vpop.permute.xlu0 %582
    %585 = vset.pattern.permute.xlu0 3
    %586 = vperm.xlu0 %585, %v36
    %v587 = vpop.permute.xlu0 %586
    %vm589 = vcmp.gt.f32.partialorder %v524, %v527
    %vm590 = vcmp.gt.f32.partialorder %v524, %v531
    %vm591 = vcmp.gt.f32.partialorder %v524, %v535
    %vm592 = vcmp.gt.f32.partialorder %v524, %v539
    %vm593 = vcmp.gt.f32.partialorder %v524, %v543
    %vm594 = vcmp.gt.f32.partialorder %v524, %v547
    %vm595 = vcmp.gt.f32.partialorder %v524, %v551
    %vm596 = vcmp.gt.f32.partialorder %v524, %v555
    %vm597 = vcmp.gt.f32.partialorder %v524, %v559
    %vm598 = vcmp.gt.f32.partialorder %v524, %v563
    %vm599 = vcmp.gt.f32.partialorder %v524, %v567
    %vm600 = vcmp.gt.f32.partialorder %v524, %v571
    %vm601 = vcmp.gt.f32.partialorder %v524, %v575
    %vm602 = vcmp.gt.f32.partialorder %v524, %v579
    %vm603 = vcmp.gt.f32.partialorder %v524, %v583
    %vm604 = vcmp.gt.f32.partialorder %v524, %v587
    %vm605 = vcmp.lt.f32.partialorder %v524, %v527
    %vm606 = vcmp.lt.f32.partialorder %v524, %v531
    %vm607 = vcmp.lt.f32.partialorder %v524, %v535
    %vm608 = vcmp.lt.f32.partialorder %v524, %v539
    %vm609 = vcmp.lt.f32.partialorder %v524, %v543
    %vm610 = vcmp.lt.f32.partialorder %v524, %v547
    %vm611 = vcmp.lt.f32.partialorder %v524, %v551
    %vm612 = vcmp.lt.f32.partialorder %v524, %v555
    %vm613 = vcmp.lt.f32.partialorder %v524, %v559
    %vm614 = vcmp.lt.f32.partialorder %v524, %v563
    %vm615 = vcmp.lt.f32.partialorder %v524, %v567
    %vm616 = vcmp.lt.f32.partialorder %v524, %v571
    %vm617 = vcmp.lt.f32.partialorder %v524, %v575
    %vm618 = vcmp.lt.f32.partialorder %v524, %v579
    %vm619 = vcmp.lt.f32.partialorder %v524, %v583
    %vm620 = vcmp.lt.f32.partialorder %v524, %v587
    %v621 = vsel %vm605, 0.0, 0.5
    %v622 = vsel %vm606, 0.0, 0.5
    %v623 = vsel %vm607, 0.0, 0.5
    %v624 = vsel %vm608, 0.0, 0.5
    %v625 = vsel %vm609, 0.0, 0.5
    %v626 = vsel %vm610, 0.0, 0.5
    %v627 = vsel %vm611, 0.0, 0.5
    %v628 = vsel %vm612, 0.0, 0.5
    %v629 = vsel %vm613, 0.0, 0.5
    %v630 = vsel %vm614, 0.0, 0.5
    %v631 = vsel %vm615, 0.0, 0.5
    %v632 = vsel %vm616, 0.0, 0.5
    %v633 = vsel %vm617, 0.0, 0.5
    %v634 = vsel %vm618, 0.0, 0.5
    %v635 = vsel %vm619, 0.0, 0.5
    %v636 = vsel %vm620, 0.0, 0.5
    %v637 = vsel %vm589, 1.0, %v621
    %v638 = vsel %vm590, 1.0, %v622
    %v639 = vsel %vm591, 1.0, %v623
    %v640 = vsel %vm592, 1.0, %v624
    %v641 = vsel %vm593, 1.0, %v625
    %v642 = vsel %vm594, 1.0, %v626
    %v643 = vsel %vm595, 1.0, %v627
    %v644 = vsel %vm596, 1.0, %v628
    %v645 = vsel %vm597, 1.0, %v629
    %v646 = vsel %vm598, 1.0, %v630
    %v647 = vsel %vm599, 1.0, %v631
    %v648 = vsel %vm600, 1.0, %v632
    %v649 = vsel %vm601, 1.0, %v633
    %v650 = vsel %vm602, 1.0, %v634
    %v651 = vsel %vm603, 1.0, %v635
    %v652 = vsel %vm604, 1.0, %v636
    %v653 = vld [vmem:[#allocation2 + $0x3] sm:$0x1]
    %v654 = vadd.f32 %v637, %v638
    %v655 = vadd.f32 %v654, %v639
    %v656 = vadd.f32 %v655, %v640
    %v657 = vadd.f32 %v656, %v641
    %v658 = vadd.f32 %v657, %v642
    %v659 = vadd.f32 %v658, %v643
    %v660 = vadd.f32 %v659, %v644
    %v661 = vadd.f32 %v660, %v645
    %v662 = vadd.f32 %v661, %v646
    %v663 = vadd.f32 %v662, %v647
    %v664 = vadd.f32 %v663, %v648
    %v665 = vadd.f32 %v664, %v649
    %v666 = vadd.f32 %v665, %v650
    %v667 = vadd.f32 %v666, %v651
    %v668 = vadd.f32 %v667, %v652
    %v669 = vrot.slane %v668, 4
    %v670 = vadd.f32 %v668, %v669
    %v671 = vrot.slane %v670, 2
    %v672 = vadd.f32 %v670, %v671
    %v673 = vrot.slane %v672, 1
    %v674 = vadd.f32 %v672, %v673
    %v675 = vadd.f32 %v653, %v674
    %676 = vst [vmem:[#allocation2 + $0x3] sm:$0x1] %v675
    // Predicated region
    $region18: #{tpu_custom_call.1} parent=1 // pred_check
      %p677 = pneg %p15
    $region19: #{tpu_custom_call.1} parent=1 // pred_check_branch
      %679 = sbr.rel (%p677) target = $region21
    $region20: #{tpu_custom_call.1} parent=1 // pred_region
      %v680 = vld [vmem:[%s2] sm:$0xf]
      %v681 = vld [vmem:[#allocation2] sm:$0xf]
      %v682 = vmul.f32 %v680, %v681
      %683 = vst [vmem:[#allocation3] sm:$0xf] %v682
    $region21: #{tpu_custom_call.1} parent=1 // pred_fallthru
      _
    // Predicated region
    $region22: #{tpu_custom_call.1} parent=1 // pred_check
      _
    $region23: #{tpu_custom_call.1} parent=1 // pred_check_branch
      %685 = sbr.rel (0) target = $region25
    $region24: #{tpu_custom_call.1} parent=1 // pred_region
      %s687 = ssub.s32 64, 64
      %688 = vsyncadd [#allocation4], %s687
      %s690 = sshll.u32 [#allocation3], 4
      %s691 = int_to_ptr.vmem [resolvable:$true] %s690
      %693 = dma.vmem_to_hbm [thread:$0]  %s691, 64, %s3, [#allocation4]
    $region25: #{tpu_custom_call.1} parent=1 // pred_fallthru
      _
    // Predicated region
    $region26: #{tpu_custom_call.1} parent=1 // pred_check
      _
    $region27: #{tpu_custom_call.1} parent=1 // pred_check_branch
      %695 = sbr.rel (0) target = $region29
    $region28: #{tpu_custom_call.1} parent=1 // pred_region
      %696 = dma.done [#allocation4], 64
    $region29: #{tpu_custom_call.1} parent=1 // pred_fallthru
      _
    %697 = vsyncpa [#allocation4], 1

</llo_original>
